<compile_context>
chip_gen: v7x
topology: tpu7x:2x2x1
jax: 0.10.0
libtpu: 0.0.40
codegen_flags: <defaults>
</compile_context>

<pallas_src>
import functools

import jax
import jax.numpy as jnp
from jax.experimental import pallas as pl
from jax.experimental.pallas import tpu as pltpu

# ---------------- model sizes ----------------
D_IN = 32          # raw node-feature width fed to the GIN layer
HID = 512          # GIN output width == linear1.in_features
H2 = 256           # linear1.out_features == BatchNorm1d(num_features)
ATT = 3            # attack_attention.out_features == classifier.in_features
NUM_LABELS = 4     # classifier.out_features (num_labels)
G_PAD = 8          # graphs padded to one sublane group
OUT_PAD = 128      # lane padding for the tiny num_labels output dim
NODE_TILE = 256    # node rows per grid step (raise to 512/1024 on v5e/v6e)
BN_EPS = 1e-5
GIN_EPS = 0.0


def _gin_pool_kernel(agg_ref, pool_ref, wg_ref, bg_ref, o_ref):
    """One node row-tile: h = ReLU(agg @ Wg + bg); emit partial pooled sums."""
    f32 = jnp.float32
    h = jnp.dot(agg_ref[...], wg_ref[...], preferred_element_type=f32)   # bf16 MXU
    h = jnp.maximum(h + bg_ref[...], 0.0)                                # [TILE, HID] f32
    # Partial mean-pool for this node tile (pool rows already carry 1/count).
    o_ref[...] = jnp.dot(pool_ref[...], h,
                         preferred_element_type=f32)[None, :, :]         # [1, G_PAD, HID]


def _head_kernel(part_ref, av_ref, w1_ref, watt_ref, wcls_ref, vecs_ref, o_ref,
                 *, num_graphs):
    """Pool-reduce + linear1 + BN(train stats) + ReLU + attention + classifier."""
    f32 = jnp.float32
    pooled = jnp.sum(part_ref[...], axis=0)                              # [G_PAD, HID]

    # linear1 (bf16 weights, f32 accumulate); bias from packed vector block.
    y = jnp.dot(pooled.astype(jnp.bfloat16), w1_ref[...],
                preferred_element_type=f32) + vecs_ref[0:1, :]           # [G_PAD, H2]

    # BatchNorm1d, training-mode batch statistics over the real graphs only.
    rows = jax.lax.broadcasted_iota(jnp.int32, (G_PAD, 1), 0)
    mask = (rows < num_graphs).astype(f32)
    inv_g = 1.0 / float(num_graphs)
    mu = jnp.sum(y * mask, axis=0, keepdims=True) * inv_g
    d = (y - mu) * mask
    var = jnp.sum(d * d, axis=0, keepdims=True) * inv_g
    y = (y - mu) * jax.lax.rsqrt(var + BN_EPS) * vecs_ref[1:2, :] + vecs_ref[2:3, :]
    y = jnp.maximum(y, 0.0)                                              # [G_PAD, H2]

    # attack_attention (3 outputs) + attack_vector scaling + classifier, all on
    # the VPU/XLU: 3 lane-reductions + 3 FMAs instead of padded MXU matmuls.
    out = jnp.broadcast_to(vecs_ref[4:5, :OUT_PAD], (G_PAD, OUT_PAD))    # b_cls
    for a in range(ATT):
        att_a = jnp.sum(y * watt_ref[a:a + 1, :], axis=1, keepdims=True)
        att_a = att_a + vecs_ref[3:4, a:a + 1]                           # + b_att[a]
        out = out + (av_ref[:, a:a + 1] * att_a) * wcls_ref[a:a + 1, :]
    o_ref[...] = out


def init_params(key):
    ks = jax.random.split(key, 8)
    s = 0.1
    return {
        "w_gin": s * jax.random.normal(ks[0], (D_IN, HID), jnp.float32),
        "b_gin": s * jax.random.normal(ks[1], (HID,), jnp.float32),
        "w1": s * jax.random.normal(ks[2], (HID, H2), jnp.float32),
        "b1": s * jax.random.normal(ks[3], (H2,), jnp.float32),
        "gamma": jnp.ones((H2,), jnp.float32),
        "beta": jnp.zeros((H2,), jnp.float32),
        "w_att": s * jax.random.normal(ks[4], (H2, ATT), jnp.float32),
        "b_att": s * jax.random.normal(ks[5], (ATT,), jnp.float32),
        "w_cls": s * jax.random.normal(ks[6], (ATT, NUM_LABELS), jnp.float32),
        "b_cls": s * jax.random.normal(ks[7], (NUM_LABELS,), jnp.float32),
    }


def prepare_params(params):
    """One-time weight prep (hoisted out of the per-call path): bf16 casting of
    matmul weights, padding of tiny 3-/4-wide tensors, packing of small vectors
    into a single [8, H2] block (rows: b1, gamma, beta, b_att, b_cls)."""
    f32, bf16 = jnp.float32, jnp.bfloat16
    vecs = jnp.zeros((8, H2), f32)
    vecs = vecs.at[0].set(params["b1"])
    vecs = vecs.at[1].set(params["gamma"])
    vecs = vecs.at[2].set(params["beta"])
    vecs = vecs.at[3, :ATT].set(params["b_att"])
    vecs = vecs.at[4, :NUM_LABELS].set(params["b_cls"])
    return {
        "w_gin": params["w_gin"].astype(bf16),                               # [D_IN, HID]
        "b_gin": params["b_gin"][None, :].astype(f32),                       # [1, HID]
        "w1": params["w1"].astype(bf16),                                     # [HID, H2]
        "watt_t": jnp.zeros((8, H2), f32).at[:ATT, :].set(params["w_att"].T),
        "wcls": jnp.zeros((8, OUT_PAD), f32).at[:ATT, :NUM_LABELS].set(params["w_cls"]),
        "vecs": vecs,
    }


def drug_regression_forward(v, attack_vector, edge_index, batch, num_graphs, prep):
    """Forward pass. Sparse neighbor aggregation + pooling matrix are built
    with O(E*D + G*N) XLA ops (no O(N^2) adjacency); all matmul / BN / head
    math runs in the two Pallas kernels."""
    f32, bf16 = jnp.float32, jnp.bfloat16
    N = v.shape[0]
    G = int(num_graphs)
    T = (N + NODE_TILE - 1) // NODE_TILE
    n_pad = T * NODE_TILE

    # GIN aggregation: (1 + eps) * x + sum of incoming neighbor features.
    v = v.astype(f32)
    nbr = jnp.zeros((N, D_IN), f32).at[edge_index[1]].add(v[edge_index[0]])
    agg = ((1.0 + GIN_EPS) * v + nbr).astype(bf16)
    agg = jnp.zeros((n_pad, D_IN), bf16).at[:N].set(agg)

    # Mean-pool matrix [G_PAD, n_pad]: pool[g, n] = 1/|graph g| if batch[n]==g.
    one_hot = (batch[None, :] == jnp.arange(G_PAD, dtype=batch.dtype)[:, None]).astype(f32)
    counts = jnp.maximum(jnp.sum(one_hot, axis=1, keepdims=True), 1.0)
    pool = jnp.zeros((G_PAD, n_pad), f32).at[:, :N].set(one_hot / counts)

    # Per-call padding of the (input) attack vector only — weights are pre-padded.
    av_pad = jnp.zeros((G_PAD, OUT_PAD), f32).at[:G, :ATT].set(attack_vector)

    # --- stage 1: GIN MLP + partial mean-pool, parallel over node row-tiles ---
    partial = pl.pallas_call(
        _gin_pool_kernel,
        out_shape=jax.ShapeDtypeStruct((T, G_PAD, HID), f32),
        grid=(T,),
        in_specs=[
            pl.BlockSpec((NODE_TILE, D_IN), lambda i: (i, 0)),
            pl.BlockSpec((G_PAD, NODE_TILE), lambda i: (0, i)),
            pl.BlockSpec((D_IN, HID), lambda i: (0, 0)),
            pl.BlockSpec((1, HID), lambda i: (0, 0)),
        ],
        out_specs=pl.BlockSpec((1, G_PAD, HID), lambda i: (i, 0, 0)),
        compiler_params=pltpu.CompilerParams(
            dimension_semantics=("parallel",)),
    )(agg, pool, prep["w_gin"], prep["b_gin"])

    # --- stage 2: pooled head (tiny; single invocation) ---
    vmem = pl.BlockSpec(memory_space=pltpu.MemorySpace.VMEM)
    out = pl.pallas_call(
        functools.partial(_head_kernel, num_graphs=G),
        out_shape=jax.ShapeDtypeStruct((G_PAD, OUT_PAD), f32),
        in_specs=[vmem] * 6,
        out_specs=vmem,
    )(partial, av_pad, prep["w1"], prep["watt_t"], prep["wcls"], prep["vecs"])

    return out[:G, :NUM_LABELS]


def _reference_forward(v, attack_vector, edge_index, batch, num_graphs, params):
    """Pure-JAX reference at the same precision as the kernels (bf16 weights /
    matmul inputs, f32 accumulation and elementwise math)."""
    f32, bf16 = jnp.float32, jnp.bfloat16
    N = v.shape[0]
    v = v.astype(f32)
    nbr = jnp.zeros((N, D_IN), f32).at[edge_index[1]].add(v[edge_index[0]])
    agg = ((1.0 + GIN_EPS) * v + nbr).astype(bf16)
    h = jnp.maximum(
        jnp.dot(agg, params["w_gin"].astype(bf16), preferred_element_type=f32)
        + params["b_gin"], 0.0)

    one_hot = (batch[None, :] == jnp.arange(num_graphs, dtype=batch.dtype)[:, None]).astype(f32)
    counts = jnp.maximum(jnp.sum(one_hot, axis=1, keepdims=True), 1.0)
    pooled = (one_hot / counts) @ h

    y = jnp.dot(pooled.astype(bf16), params["w1"].astype(bf16),
                preferred_element_type=f32) + params["b1"]
    mu = y.mean(axis=0, keepdims=True)
    var = ((y - mu) ** 2).mean(axis=0, keepdims=True)
    y = (y - mu) / jnp.sqrt(var + BN_EPS) * params["gamma"] + params["beta"]
    y = jnp.maximum(y, 0.0)
    att = attack_vector * (y @ params["w_att"] + params["b_att"])
    return att @ params["w_cls"] + params["b_cls"]


if __name__ == "__main__":
    key = jax.random.PRNGKey(0)
    k_param, k_v, k_e, k_av = jax.random.split(key, 4)

    N = 16            # total nodes
    G = 4             # graphs in the batch (4 nodes each)
    E = 40            # edges

    params = init_params(k_param)
    prep = prepare_params(params)   # one-time: pad / pack / bf16-cast weights

    v = jax.random.normal(k_v, (N, D_IN), jnp.float32)
    edge_index = jax.random.randint(k_e, (2, E), 0, N, dtype=jnp.int32)
    batch = jnp.repeat(jnp.arange(G, dtype=jnp.int32), N // G)
    attack_vector = jax.random.normal(k_av, (G, ATT), jnp.float32)

    out = drug_regression_forward(v, attack_vector, edge_index, batch, G, prep)
    out = jax.block_until_ready(out)

    ref = _reference_forward(v, attack_vector, edge_index, batch, G, params)
    assert out.shape == (G, NUM_LABELS)
    assert jnp.allclose(out, ref, atol=2e-2, rtol=1e-2), (out, ref)

    print("KERNEL_OK")
</pallas_src>

<mosaic_0001>
module attributes {stable_mosaic.version = 11 : i64} {
  func.func @_gin_pool_kernel(%arg0: i32, %arg1: memref<256x32xbf16, #tpu.memory_space<vmem>>, %arg2: memref<8x256xf32, #tpu.memory_space<vmem>>, %arg3: memref<32x512xbf16, #tpu.memory_space<vmem>>, %arg4: memref<1x512xf32, #tpu.memory_space<vmem>>, %arg5: memref<1x8x512xf32, #tpu.memory_space<vmem>>) attributes {dimension_semantics = [#tpu.dimension_semantics<parallel>], iteration_bounds = array<i64: 1>, scalar_prefetch = 0 : i64, scratch_operands = 0 : i64, tpu.core_type = #tpu.core_type<tc>, window_params = [{transform_indices = @transform_0, window_bounds = array<i64: 256, 32>}, {transform_indices = @transform_1, window_bounds = array<i64: 8, 256>}, {pipeline_mode = #tpu.pipeline_mode<synchronous>, transform_indices = @transform_2, window_bounds = array<i64: 32, 512>}, {pipeline_mode = #tpu.pipeline_mode<synchronous>, transform_indices = @transform_3, window_bounds = array<i64: 1, 512>}, {transform_indices = @transform_4, window_bounds = array<i64: 1, 8, 512>}]} {
    %c0 = arith.constant 0 : index
    %c0_0 = arith.constant 0 : index
    %0 = vector.load %arg1[%c0, %c0_0] : memref<256x32xbf16, #tpu.memory_space<vmem>>, vector<256x32xbf16>
    %c0_1 = arith.constant 0 : index
    %c0_2 = arith.constant 0 : index
    %1 = vector.load %arg3[%c0_1, %c0_2] : memref<32x512xbf16, #tpu.memory_space<vmem>>, vector<32x512xbf16>
    %cst = arith.constant dense<0.000000e+00> : vector<256x512xf32>
    %2 = tpu.matmul %0, %1, %cst {dimension_numbers = #tpu.dot_dimension_numbers<[1], [0], [0], [1], [0, 0, 1, 1], [], []>} : vector<256x32xbf16>, vector<32x512xbf16>, vector<256x512xf32> -> vector<256x512xf32>
    %c0_3 = arith.constant 0 : index
    %c0_4 = arith.constant 0 : index
    %3 = vector.load %arg4[%c0_3, %c0_4] : memref<1x512xf32, #tpu.memory_space<vmem>>, vector<1x512xf32>
    %4 = vector.broadcast %3 : vector<1x512xf32> to vector<256x512xf32>
    %5 = arith.addf %2, %4 : vector<256x512xf32>
    %cst_5 = arith.constant 0.000000e+00 : f32
    %6 = vector.broadcast %cst_5 : f32 to vector<256x512xf32>
    %7 = arith.maximumf %5, %6 : vector<256x512xf32>
    %c0_6 = arith.constant 0 : index
    %c0_7 = arith.constant 0 : index
    %8 = vector.load %arg2[%c0_6, %c0_7] : memref<8x256xf32, #tpu.memory_space<vmem>>, vector<8x256xf32>
    %cst_8 = arith.constant dense<0.000000e+00> : vector<8x512xf32>
    %9 = tpu.matmul %8, %7, %cst_8 {dimension_numbers = #tpu.dot_dimension_numbers<[1], [0], [0], [1], [0, 0, 1, 1], [], []>} : vector<8x256xf32>, vector<256x512xf32>, vector<8x512xf32> -> vector<8x512xf32>
    %10 = vector.shape_cast %9 : vector<8x512xf32> to vector<1x8x512xf32>
    %c0_9 = arith.constant 0 : index
    %c0_10 = arith.constant 0 : index
    %c0_11 = arith.constant 0 : index
    %11 = vector.load %arg5[%c0_9, %c0_10, %c0_11] : memref<1x8x512xf32, #tpu.memory_space<vmem>>, vector<1x8x512xf32>
    tpu.vector_store %arg5[%c0_9, %c0_10, %c0_11], %10 {strides = array<i32>} : memref<1x8x512xf32, #tpu.memory_space<vmem>>, vector<1x8x512xf32>,
    return
  }
  func.func @transform_0(%arg0: i32) -> (i32, i32) {
    %c0_i32 = arith.constant 0 : i32
    %c0_i32_0 = arith.constant 0 : i32
    return %arg0, %c0_i32 : i32, i32
  }
  func.func @transform_1(%arg0: i32) -> (i32, i32) {
    %c0_i32 = arith.constant 0 : i32
    %c0_i32_0 = arith.constant 0 : i32
    return %c0_i32, %arg0 : i32, i32
  }
  func.func @transform_2(%arg0: i32) -> (i32, i32) {
    %c0_i32 = arith.constant 0 : i32
    %c0_i32_0 = arith.constant 0 : i32
    %c0_i32_1 = arith.constant 0 : i32
    return %c0_i32, %c0_i32_0 : i32, i32
  }
  func.func @transform_3(%arg0: i32) -> (i32, i32) {
    %c0_i32 = arith.constant 0 : i32
    %c0_i32_0 = arith.constant 0 : i32
    %c0_i32_1 = arith.constant 0 : i32
    return %c0_i32, %c0_i32_0 : i32, i32
  }
  func.func @transform_4(%arg0: i32) -> (i32, i32, i32) {
    %c0_i32 = arith.constant 0 : i32
    %c0_i32_0 = arith.constant 0 : i32
    %c0_i32_1 = arith.constant 0 : i32
    return %arg0, %c0_i32, %c0_i32_0 : i32, i32, i32
  }
}

</mosaic_0001>

<llo_original>
// kernel: tpu_custom_call.1
$region0: #{tpu_custom_call.1}
  #allocation0 [shape = 'u32[]', space=smem, size = 0x4, offset = 0x4, fixed_abs, tag = 'smem constant byte address 0x4 - core index']
  #allocation1 [shape = 'u32[144,128]{1,0:T(1,128)}', space=vmem, size = 0x12000, scoped, tag = 'internal scratch']
  %s0 = inlined_call_operand.vmem [shape: bf16[256,32], index: 0, kind: input, shape index: {}]
  %s1 = inlined_call_operand.vmem [shape: f32[8,256], index: 1, kind: input, shape index: {}]
  %s2 = inlined_call_operand.vmem [shape: bf16[32,512], index: 2, kind: input, shape index: {}]
  %s3 = inlined_call_operand.vmem [shape: f32[1,512], index: 3, kind: input, shape index: {}]
  %s4 = inlined_call_operand.hbm [shape: f32[1,8,512], index: 4, kind: output, shape index: {}]
  %s5 = sld [smem:[#allocation0]]
  $region26: #{tpu_custom_call.1} parent=0
    _
  %s7 = ssub.s32 1, %s5
  %s8 = scalar_select 0, %s7, %s5
  $region1: #{tpu_custom_call.1} parent=0
    #allocation2 [shape = 'u8[16384]{0}', space=vmem, size = 0x4000, scoped, tag = 'output window, operand 0, single buffered']
    #allocation3 [shape = 's32[1]{0}', space=sflag, size = 0x4, scoped, tag = 'scoped memory for tpu_custom_call.1']
    %9 = vsyncpa [#allocation3], 0
    // Predicated region
    $region2: #{tpu_custom_call.1} parent=1 // pred_check
      _
    $region3: #{tpu_custom_call.1} parent=1 // pred_check_branch
      %11 = sbr.rel (0) target = $region5
    $region4: #{tpu_custom_call.1} parent=1 // pred_region
      _
    $region5: #{tpu_custom_call.1} parent=1 // pred_fallthru
      _
    // Predicated region
    $region6: #{tpu_custom_call.1} parent=1 // pred_check
      _
    $region7: #{tpu_custom_call.1} parent=1 // pred_check_branch
      %13 = sbr.rel (0) target = $region9
    $region8: #{tpu_custom_call.1} parent=1 // pred_region
      _
    $region9: #{tpu_custom_call.1} parent=1 // pred_fallthru
      _
    // Predicated region
    $region10: #{tpu_custom_call.1} parent=1 // pred_check
      _
    $region11: #{tpu_custom_call.1} parent=1 // pred_check_branch
      %15 = sbr.rel (0) target = $region13
    $region12: #{tpu_custom_call.1} parent=1 // pred_region
      _
    $region13: #{tpu_custom_call.1} parent=1 // pred_fallthru
      _
    // Predicated region
    $region14: #{tpu_custom_call.1} parent=1 // pred_check
      _
    $region15: #{tpu_custom_call.1} parent=1 // pred_check_branch
      %17 = sbr.rel (0) target = $region17
    $region16: #{tpu_custom_call.1} parent=1 // pred_region
      _
    $region17: #{tpu_custom_call.1} parent=1 // pred_fallthru
      _
    %v19 = vld [vmem:[%s0] sm:$0xf]
    %v20 = vld [vmem:[%s0 + $0x4] sm:$0xf]
    %v21 = vld [vmem:[%s0 + $0x8] sm:$0xf]
    %v22 = vld [vmem:[%s0 + $0xc] sm:$0xf]
    %v23 = vld [vmem:[%s0 + $0x10] sm:$0xf]
    %v24 = vld [vmem:[%s0 + $0x14] sm:$0xf]
    %v25 = vld [vmem:[%s0 + $0x18] sm:$0xf]
    %v26 = vld [vmem:[%s0 + $0x1c] sm:$0xf]
    %v27 = vld [vmem:[%s0 + $0x20] sm:$0xf]
    %v28 = vld [vmem:[%s0 + $0x24] sm:$0xf]
    %v29 = vld [vmem:[%s0 + $0x28] sm:$0xf]
    %v30 = vld [vmem:[%s0 + $0x2c] sm:$0xf]
    %v31 = vld [vmem:[%s0 + $0x30] sm:$0xf]
    %v32 = vld [vmem:[%s0 + $0x34] sm:$0xf]
    %v33 = vld [vmem:[%s0 + $0x38] sm:$0xf]
    %v34 = vld [vmem:[%s0 + $0x3c] sm:$0xf]
    %v35 = vld [vmem:[%s0 + $0x40] sm:$0xf]
    %v36 = vld [vmem:[%s0 + $0x44] sm:$0xf]
    %v37 = vld [vmem:[%s0 + $0x48] sm:$0xf]
    %v38 = vld [vmem:[%s0 + $0x4c] sm:$0xf]
    %v39 = vld [vmem:[%s0 + $0x50] sm:$0xf]
    %v40 = vld [vmem:[%s0 + $0x54] sm:$0xf]
    %v41 = vld [vmem:[%s0 + $0x58] sm:$0xf]
    %v42 = vld [vmem:[%s0 + $0x5c] sm:$0xf]
    %v43 = vld [vmem:[%s0 + $0x60] sm:$0xf]
    %v44 = vld [vmem:[%s0 + $0x64] sm:$0xf]
    %v45 = vld [vmem:[%s0 + $0x68] sm:$0xf]
    %v46 = vld [vmem:[%s0 + $0x6c] sm:$0xf]
    %v47 = vld [vmem:[%s0 + $0x70] sm:$0xf]
    %v48 = vld [vmem:[%s0 + $0x74] sm:$0xf]
    %v49 = vld [vmem:[%s0 + $0x78] sm:$0xf]
    %v50 = vld [vmem:[%s0 + $0x7c] sm:$0xf]
    %v51 = vld [vmem:[%s2] sm:$0xff]
    %v52 = vld [vmem:[%s2 + $0x8] sm:$0xff]
    %v53 = vld [vmem:[%s2 + $0x10] sm:$0xff]
    %v54 = vld [vmem:[%s2 + $0x18] sm:$0xff]
    %v55 = vld [vmem:[%s2 + $0x20] sm:$0xff]
    %v56 = vld [vmem:[%s2 + $0x28] sm:$0xff]
    %v57 = vld [vmem:[%s2 + $0x30] sm:$0xff]
    %v58 = vld [vmem:[%s2 + $0x38] sm:$0xff]
    %v59 = vld [vmem:[%s3] sm:$0xf]
    %v61 = vlaneseq
    %v62 = vshrl.u32 %v61, 7
    %v63 = vsub.s32 0, %v62
    %v64 = vrot.slane %v59, %v63
    %v65 = vlaneseq
    %v66 = vshrl.u32 %v65, 7
    %v67 = vsub.s32 1, %v66
    %v68 = vrot.slane %v59, %v67
    %v69 = vlaneseq
    %v70 = vshrl.u32 %v69, 7
    %v71 = vsub.s32 2, %v70
    %v72 = vrot.slane %v59, %v71
    %v73 = vlaneseq
    %v74 = vshrl.u32 %v73, 7
    %v75 = vsub.s32 3, %v74
    %v76 = vrot.slane %v59, %v75
    %v113 = vunpack.c.l.b16 %v19
    %v114 = vunpack.c.l.b16 %v20
    %v115 = vunpack.c.l.b16 %v21
    %v116 = vunpack.c.l.b16 %v22
    %v117 = vunpack.c.l.b16 %v23
    %v118 = vunpack.c.l.b16 %v24
    %v119 = vunpack.c.l.b16 %v25
    %v120 = vunpack.c.l.b16 %v26
    %v121 = vunpack.c.l.b16 %v27
    %v122 = vunpack.c.l.b16 %v28
    %v123 = vunpack.c.l.b16 %v29
    %v124 = vunpack.c.l.b16 %v30
    %v125 = vunpack.c.l.b16 %v31
    %v126 = vunpack.c.l.b16 %v32
    %v127 = vunpack.c.l.b16 %v33
    %v128 = vunpack.c.l.b16 %v34
    %v129 = vunpack.c.l.b16 %v35
    %v130 = vunpack.c.l.b16 %v36
    %v131 = vunpack.c.l.b16 %v37
    %v132 = vunpack.c.l.b16 %v38
    %v133 = vunpack.c.l.b16 %v39
    %v134 = vunpack.c.l.b16 %v40
    %v135 = vunpack.c.l.b16 %v41
    %v136 = vunpack.c.l.b16 %v42
    %v137 = vunpack.c.l.b16 %v43
    %v138 = vunpack.c.l.b16 %v44
    %v139 = vunpack.c.l.b16 %v45
    %v140 = vunpack.c.l.b16 %v46
    %v141 = vunpack.c.l.b16 %v47
    %v142 = vunpack.c.l.b16 %v48
    %v143 = vunpack.c.l.b16 %v49
    %v144 = vunpack.c.l.b16 %v50
    %v145 = vpack.c.b16 %v114, %v113
    %v146 = vpack.c.b16 %v116, %v115
    %v147 = vpack.c.b16 %v118, %v117
    %v148 = vpack.c.b16 %v120, %v119
    %v149 = vpack.c.b16 %v122, %v121
    %v150 = vpack.c.b16 %v124, %v123
    %v151 = vpack.c.b16 %v126, %v125
    %v152 = vpack.c.b16 %v128, %v127
    %v153 = vpack.c.b16 %v130, %v129
    %v154 = vpack.c.b16 %v132, %v131
    %v155 = vpack.c.b16 %v134, %v133
    %v156 = vpack.c.b16 %v136, %v135
    %v157 = vpack.c.b16 %v138, %v137
    %v158 = vpack.c.b16 %v140, %v139
    %v159 = vpack.c.b16 %v142, %v141
    %v160 = vpack.c.b16 %v144, %v143
    %v169 = vunpack.c.l.b16 %v51
    %v170 = vunpack.c.h.b16 %v51
    %v171 = vunpack.c.l.b16 %v52
    %v172 = vunpack.c.h.b16 %v52
    %v173 = vunpack.c.l.b16 %v53
    %v174 = vunpack.c.h.b16 %v53
    %v175 = vunpack.c.l.b16 %v54
    %v176 = vunpack.c.h.b16 %v54
    %v177 = vunpack.c.l.b16 %v55
    %v178 = vunpack.c.h.b16 %v55
    %v179 = vunpack.c.l.b16 %v56
    %v180 = vunpack.c.h.b16 %v56
    %v181 = vunpack.c.l.b16 %v57
    %v182 = vunpack.c.h.b16 %v57
    %v183 = vunpack.c.l.b16 %v58
    %v184 = vunpack.c.h.b16 %v58
    %v185 = vpack.c.b16 %v173, %v169
    %v186 = vpack.c.b16 %v174, %v170
    %v187 = vpack.c.b16 %v175, %v171
    %v188 = vpack.c.b16 %v176, %v172
    %v189 = vpack.c.b16 %v181, %v177
    %v190 = vpack.c.b16 %v182, %v178
    %v191 = vpack.c.b16 %v183, %v179
    %v192 = vpack.c.b16 %v184, %v180
    %vm201 = vcmask 261120
    %v203 = vsel %vm201, %v145, 0
    %v206 = vsel %vm201, %v146, 0
    %v209 = vsel %vm201, %v147, 0
    %v212 = vsel %vm201, %v148, 0
    %v215 = vsel %vm201, %v149, 0
    %v218 = vsel %vm201, %v150, 0
    %v221 = vsel %vm201, %v151, 0
    %v224 = vsel %vm201, %v152, 0
    %v227 = vsel %vm201, %v153, 0
    %v230 = vsel %vm201, %v154, 0
    %v233 = vsel %vm201, %v155, 0
    %v236 = vsel %vm201, %v156, 0
    %v239 = vsel %vm201, %v157, 0
    %v242 = vsel %vm201, %v158, 0
    %v245 = vsel %vm201, %v159, 0
    %v248 = vsel %vm201, %v160, 0
    %250 = vmatprep.subr.bf16.mxu0 %v186
    %251 = vmatpush1.bf16.msra.mxu0 %v185
    %252 = vmatprep.subr.bf16.mxu0 %v190
    %253 = vmatpush1.bf16.msra.mxu0 %v189
    %254 = vmatprep.subr.bf16.mxu0 0
    %255 = vmatpush1.bf16.msra.mxu0 0
    %256 = vmatprep.subr.bf16.mxu0 0
    %257 = vmatpush1.bf16.msra.mxu0 0
    %258 = vmatprep.subr.bf16.mxu0 0
    %259 = vmatpush1.bf16.msra.mxu0 0
    %260 = vmatprep.subr.bf16.mxu0 0
    %261 = vmatpush1.bf16.msra.mxu0 0
    %262 = vmatprep.subr.bf16.mxu0 0
    %263 = vmatpush1.bf16.msra.mxu0 0
    %264 = vmatprep.subr.bf16.mxu0 0
    %265 = vmatpush1.bf16.msra.mxu0 0
    %266 = vmatprep.subr.bf16.mxu0 0
    %267 = vmatpush1.bf16.msra.mxu0 0
    %268 = vmatprep.subr.bf16.mxu0 0
    %269 = vmatpush1.bf16.msra.mxu0 0
    %270 = vmatprep.subr.bf16.mxu0 0
    %271 = vmatpush1.bf16.msra.mxu0 0
    %272 = vmatprep.subr.bf16.mxu0 0
    %273 = vmatpush1.bf16.msra.mxu0 0
    %274 = vmatprep.subr.bf16.mxu0 0
    %275 = vmatpush1.bf16.msra.mxu0 0
    %276 = vmatprep.subr.bf16.mxu0 0
    %277 = vmatpush1.bf16.msra.mxu0 0
    %278 = vmatprep.subr.bf16.mxu0 0
    %279 = vmatpush1.bf16.msra.mxu0 0
    %280 = vmatprep.subr.bf16.mxu0 0
    %281 = vmatpush1.bf16.msra.mxu0 0
    %282 = vmatprep.mubr.bf16.mxu0 0
    %283 = vmatmul.mubr.bf16.gmra.mrb[0].mxu0 %v203
    %v284 = vpop.f32.mrb[0].mxu0
    %v285 = vadd.f32 %v64, %v284
    %v286 = vpop.f32.mrb[0].mxu0
    %v287 = vadd.f32 %v68, %v286
    %v288 = vpop.f32.mrb[0].mxu0
    %v289 = vadd.f32 %v64, %v288
    %v290 = vpop.f32.mrb[0].mxu0
    %v291 = vadd.f32 %v68, %v290
    %292 = vmatprep.mubr.bf16.mxu0 0
    %293 = vmatmul.mubr.bf16.gmra.mrb[0].mxu0 %v206
    %v294 = vpop.f32.mrb[0].mxu0
    %v295 = vadd.f32 %v64, %v294
    %v296 = vpop.f32.mrb[0].mxu0
    %v297 = vadd.f32 %v68, %v296
    %v298 = vpop.f32.mrb[0].mxu0
    %v299 = vadd.f32 %v64, %v298
    %v300 = vpop.f32.mrb[0].mxu0
    %v301 = vadd.f32 %v68, %v300
    %302 = vmatprep.mubr.bf16.mxu0 0
    %303 = vmatmul.mubr.bf16.gmra.mrb[0].mxu0 %v209
    %v304 = vpop.f32.mrb[0].mxu0
    %v305 = vadd.f32 %v64, %v304
    %v306 = vpop.f32.mrb[0].mxu0
    %v307 = vadd.f32 %v68, %v306
    %v308 = vpop.f32.mrb[0].mxu0
    %v309 = vadd.f32 %v64, %v308
    %v310 = vpop.f32.mrb[0].mxu0
    %v311 = vadd.f32 %v68, %v310
    %312 = vmatprep.mubr.bf16.mxu0 0
    %313 = vmatmul.mubr.bf16.gmra.mrb[0].mxu0 %v212
    %v314 = vpop.f32.mrb[0].mxu0
    %v315 = vadd.f32 %v64, %v314
    %v316 = vpop.f32.mrb[0].mxu0
    %v317 = vadd.f32 %v68, %v316
    %v318 = vpop.f32.mrb[0].mxu0
    %v319 = vadd.f32 %v64, %v318
    %v320 = vpop.f32.mrb[0].mxu0
    %v321 = vadd.f32 %v68, %v320
    %322 = vmatprep.mubr.bf16.mxu0 0
    %323 = vmatmul.mubr.bf16.gmra.mrb[0].mxu0 %v215
    %v324 = vpop.f32.mrb[0].mxu0
    %v325 = vadd.f32 %v64, %v324
    %v326 = vpop.f32.mrb[0].mxu0
    %v327 = vadd.f32 %v68, %v326
    %v328 = vpop.f32.mrb[0].mxu0
    %v329 = vadd.f32 %v64, %v328
    %v330 = vpop.f32.mrb[0].mxu0
    %v331 = vadd.f32 %v68, %v330
    %332 = vmatprep.mubr.bf16.mxu0 0
    %333 = vmatmul.mubr.bf16.gmra.mrb[0].mxu0 %v218
    %v334 = vpop.f32.mrb[0].mxu0
    %v335 = vadd.f32 %v64, %v334
    %v336 = vpop.f32.mrb[0].mxu0
    %v337 = vadd.f32 %v68, %v336
    %v338 = vpop.f32.mrb[0].mxu0
    %v339 = vadd.f32 %v64, %v338
    %v340 = vpop.f32.mrb[0].mxu0
    %v341 = vadd.f32 %v68, %v340
    %342 = vmatprep.mubr.bf16.mxu0 0
    %343 = vmatmul.mubr.bf16.gmra.mrb[0].mxu0 %v221
    %v344 = vpop.f32.mrb[0].mxu0
    %v345 = vadd.f32 %v64, %v344
    %v346 = vpop.f32.mrb[0].mxu0
    %v347 = vadd.f32 %v68, %v346
    %v348 = vpop.f32.mrb[0].mxu0
    %v349 = vadd.f32 %v64, %v348
    %v350 = vpop.f32.mrb[0].mxu0
    %v351 = vadd.f32 %v68, %v350
    %352 = vmatprep.mubr.bf16.mxu0 0
    %353 = vmatmul.mubr.bf16.gmra.mrb[0].mxu0 %v224
    %v354 = vpop.f32.mrb[0].mxu0
    %v355 = vadd.f32 %v64, %v354
    %v356 = vpop.f32.mrb[0].mxu0
    %v357 = vadd.f32 %v68, %v356
    %v358 = vpop.f32.mrb[0].mxu0
    %v359 = vadd.f32 %v64, %v358
    %v360 = vpop.f32.mrb[0].mxu0
    %v361 = vadd.f32 %v68, %v360
    %362 = vmatprep.mubr.bf16.mxu0 0
    %363 = vmatmul.mubr.bf16.gmra.mrb[0].mxu0 %v227
    %v364 = vpop.f32.mrb[0].mxu0
    %v365 = vadd.f32 %v64, %v364
    %v366 = vpop.f32.mrb[0].mxu0
    %v367 = vadd.f32 %v68, %v366
    %v368 = vpop.f32.mrb[0].mxu0
    %v369 = vadd.f32 %v64, %v368
    %v370 = vpop.f32.mrb[0].mxu0
    %v371 = vadd.f32 %v68, %v370
    %372 = vmatprep.mubr.bf16.mxu0 0
    %373 = vmatmul.mubr.bf16.gmra.mrb[0].mxu0 %v230
    %v374 = vpop.f32.mrb[0].mxu0
    %v375 = vadd.f32 %v64, %v374
    %v376 = vpop.f32.mrb[0].mxu0
    %v377 = vadd.f32 %v68, %v376
    %v378 = vpop.f32.mrb[0].mxu0
    %v379 = vadd.f32 %v64, %v378
    %v380 = vpop.f32.mrb[0].mxu0
    %v381 = vadd.f32 %v68, %v380
    %382 = vmatprep.mubr.bf16.mxu0 0
    %383 = vmatmul.mubr.bf16.gmra.mrb[0].mxu0 %v233
    %v384 = vpop.f32.mrb[0].mxu0
    %v385 = vadd.f32 %v64, %v384
    %v386 = vpop.f32.mrb[0].mxu0
    %v387 = vadd.f32 %v68, %v386
    %v388 = vpop.f32.mrb[0].mxu0
    %v389 = vadd.f32 %v64, %v388
    %v390 = vpop.f32.mrb[0].mxu0
    %v391 = vadd.f32 %v68, %v390
    %392 = vmatprep.mubr.bf16.mxu0 0
    %393 = vmatmul.mubr.bf16.gmra.mrb[0].mxu0 %v236
    %v394 = vpop.f32.mrb[0].mxu0
    %v395 = vadd.f32 %v64, %v394
    %v396 = vpop.f32.mrb[0].mxu0
    %v397 = vadd.f32 %v68, %v396
    %v398 = vpop.f32.mrb[0].mxu0
    %v399 = vadd.f32 %v64, %v398
    %v400 = vpop.f32.mrb[0].mxu0
    %v401 = vadd.f32 %v68, %v400
    %402 = vmatprep.mubr.bf16.mxu0 0
    %403 = vmatmul.mubr.bf16.gmra.mrb[0].mxu0 %v239
    %v404 = vpop.f32.mrb[0].mxu0
    %v405 = vadd.f32 %v64, %v404
    %v406 = vpop.f32.mrb[0].mxu0
    %v407 = vadd.f32 %v68, %v406
    %v408 = vpop.f32.mrb[0].mxu0
    %v409 = vadd.f32 %v64, %v408
    %v410 = vpop.f32.mrb[0].mxu0
    %v411 = vadd.f32 %v68, %v410
    %412 = vmatprep.mubr.bf16.mxu0 0
    %413 = vmatmul.mubr.bf16.gmra.mrb[0].mxu0 %v242
    %v414 = vpop.f32.mrb[0].mxu0
    %v415 = vadd.f32 %v64, %v414
    %v416 = vpop.f32.mrb[0].mxu0
    %v417 = vadd.f32 %v68, %v416
    %v418 = vpop.f32.mrb[0].mxu0
    %v419 = vadd.f32 %v64, %v418
    %v420 = vpop.f32.mrb[0].mxu0
    %v421 = vadd.f32 %v68, %v420
    %422 = vmatprep.mubr.bf16.mxu0 0
    %423 = vmatmul.mubr.bf16.gmra.mrb[0].mxu0 %v245
    %v424 = vpop.f32.mrb[0].mxu0
    %v425 = vadd.f32 %v64, %v424
    %v426 = vpop.f32.mrb[0].mxu0
    %v427 = vadd.f32 %v68, %v426
    %v428 = vpop.f32.mrb[0].mxu0
    %v429 = vadd.f32 %v64, %v428
    %v430 = vpop.f32.mrb[0].mxu0
    %v431 = vadd.f32 %v68, %v430
    %432 = vmatprep.mubr.bf16.mxu0 0
    %433 = vmatmul.mubr.bf16.gmra.mrb[0].mxu0 %v248
    %v434 = vpop.f32.mrb[0].mxu0
    %v435 = vadd.f32 %v64, %v434
    %v436 = vpop.f32.mrb[0].mxu0
    %v437 = vadd.f32 %v68, %v436
    %v438 = vpop.f32.mrb[0].mxu0
    %v439 = vadd.f32 %v64, %v438
    %v440 = vpop.f32.mrb[0].mxu0
    %v441 = vadd.f32 %v68, %v440
    %442 = vdwg.mxu0
    %443 = vmatprep.subr.bf16.mxu0 %v188
    %444 = vmatpush1.bf16.msra.mxu0 %v187
    %445 = vmatprep.subr.bf16.mxu0 %v192
    %446 = vmatpush1.bf16.msra.mxu0 %v191
    %447 = vmatprep.subr.bf16.mxu0 0
    %448 = vmatpush1.bf16.msra.mxu0 0
    %449 = vmatprep.subr.bf16.mxu0 0
    %450 = vmatpush1.bf16.msra.mxu0 0
    %451 = vmatprep.subr.bf16.mxu0 0
    %452 = vmatpush1.bf16.msra.mxu0 0
    %453 = vmatprep.subr.bf16.mxu0 0
    %454 = vmatpush1.bf16.msra.mxu0 0
    %455 = vmatprep.subr.bf16.mxu0 0
    %456 = vmatpush1.bf16.msra.mxu0 0
    %457 = vmatprep.subr.bf16.mxu0 0
    %458 = vmatpush1.bf16.msra.mxu0 0
    %459 = vmatprep.subr.bf16.mxu0 0
    %460 = vmatpush1.bf16.msra.mxu0 0
    %461 = vmatprep.subr.bf16.mxu0 0
    %462 = vmatpush1.bf16.msra.mxu0 0
    %463 = vmatprep.subr.bf16.mxu0 0
    %464 = vmatpush1.bf16.msra.mxu0 0
    %465 = vmatprep.subr.bf16.mxu0 0
    %466 = vmatpush1.bf16.msra.mxu0 0
    %467 = vmatprep.subr.bf16.mxu0 0
    %468 = vmatpush1.bf16.msra.mxu0 0
    %469 = vmatprep.subr.bf16.mxu0 0
    %470 = vmatpush1.bf16.msra.mxu0 0
    %471 = vmatprep.subr.bf16.mxu0 0
    %472 = vmatpush1.bf16.msra.mxu0 0
    %473 = vmatprep.subr.bf16.mxu0 0
    %474 = vmatpush1.bf16.msra.mxu0 0
    %475 = vmatprep.mubr.bf16.mxu0 0
    %476 = vmatmul.mubr.bf16.gmra.mrb[0].mxu0 %v203
    %v477 = vpop.f32.mrb[0].mxu0
    %v478 = vadd.f32 %v72, %v477
    %v479 = vpop.f32.mrb[0].mxu0
    %v480 = vadd.f32 %v76, %v479
    %v481 = vpop.f32.mrb[0].mxu0
    %v482 = vadd.f32 %v72, %v481
    %v483 = vpop.f32.mrb[0].mxu0
    %v484 = vadd.f32 %v76, %v483
    %485 = vmatprep.mubr.bf16.mxu0 0
    %486 = vmatmul.mubr.bf16.gmra.mrb[0].mxu0 %v206
    %v487 = vpop.f32.mrb[0].mxu0
    %v488 = vadd.f32 %v72, %v487
    %v489 = vpop.f32.mrb[0].mxu0
    %v490 = vadd.f32 %v76, %v489
    %v491 = vpop.f32.mrb[0].mxu0
    %v492 = vadd.f32 %v72, %v491
    %v493 = vpop.f32.mrb[0].mxu0
    %v494 = vadd.f32 %v76, %v493
    %495 = vmatprep.mubr.bf16.mxu0 0
    %496 = vmatmul.mubr.bf16.gmra.mrb[0].mxu0 %v209
    %v497 = vpop.f32.mrb[0].mxu0
    %v498 = vadd.f32 %v72, %v497
    %v499 = vpop.f32.mrb[0].mxu0
    %v500 = vadd.f32 %v76, %v499
    %v501 = vpop.f32.mrb[0].mxu0
    %v502 = vadd.f32 %v72, %v501
    %v503 = vpop.f32.mrb[0].mxu0
    %v504 = vadd.f32 %v76, %v503
    %505 = vmatprep.mubr.bf16.mxu0 0
    %506 = vmatmul.mubr.bf16.gmra.mrb[0].mxu0 %v212
    %v507 = vpop.f32.mrb[0].mxu0
    %v508 = vadd.f32 %v72, %v507
    %v509 = vpop.f32.mrb[0].mxu0
    %v510 = vadd.f32 %v76, %v509
    %v511 = vpop.f32.mrb[0].mxu0
    %v512 = vadd.f32 %v72, %v511
    %v513 = vpop.f32.mrb[0].mxu0
    %v514 = vadd.f32 %v76, %v513
    %515 = vmatprep.mubr.bf16.mxu0 0
    %516 = vmatmul.mubr.bf16.gmra.mrb[0].mxu0 %v215
    %v517 = vpop.f32.mrb[0].mxu0
    %v518 = vadd.f32 %v72, %v517
    %v519 = vpop.f32.mrb[0].mxu0
    %v520 = vadd.f32 %v76, %v519
    %v521 = vpop.f32.mrb[0].mxu0
    %v522 = vadd.f32 %v72, %v521
    %v523 = vpop.f32.mrb[0].mxu0
    %v524 = vadd.f32 %v76, %v523
    %525 = vmatprep.mubr.bf16.mxu0 0
    %526 = vmatmul.mubr.bf16.gmra.mrb[0].mxu0 %v218
    %v527 = vpop.f32.mrb[0].mxu0
    %v528 = vadd.f32 %v72, %v527
    %v529 = vpop.f32.mrb[0].mxu0
    %v530 = vadd.f32 %v76, %v529
    %v531 = vpop.f32.mrb[0].mxu0
    %v532 = vadd.f32 %v72, %v531
    %v533 = vpop.f32.mrb[0].mxu0
    %v534 = vadd.f32 %v76, %v533
    %535 = vmatprep.mubr.bf16.mxu0 0
    %536 = vmatmul.mubr.bf16.gmra.mrb[0].mxu0 %v221
    %v537 = vpop.f32.mrb[0].mxu0
    %v538 = vadd.f32 %v72, %v537
    %v539 = vpop.f32.mrb[0].mxu0
    %v540 = vadd.f32 %v76, %v539
    %v541 = vpop.f32.mrb[0].mxu0
    %v542 = vadd.f32 %v72, %v541
    %v543 = vpop.f32.mrb[0].mxu0
    %v544 = vadd.f32 %v76, %v543
    %545 = vmatprep.mubr.bf16.mxu0 0
    %546 = vmatmul.mubr.bf16.gmra.mrb[0].mxu0 %v224
    %v547 = vpop.f32.mrb[0].mxu0
    %v548 = vadd.f32 %v72, %v547
    %v549 = vpop.f32.mrb[0].mxu0
    %v550 = vadd.f32 %v76, %v549
    %v551 = vpop.f32.mrb[0].mxu0
    %v552 = vadd.f32 %v72, %v551
    %v553 = vpop.f32.mrb[0].mxu0
    %v554 = vadd.f32 %v76, %v553
    %555 = vmatprep.mubr.bf16.mxu0 0
    %556 = vmatmul.mubr.bf16.gmra.mrb[0].mxu0 %v227
    %v557 = vpop.f32.mrb[0].mxu0
    %v558 = vadd.f32 %v72, %v557
    %v559 = vpop.f32.mrb[0].mxu0
    %v560 = vadd.f32 %v76, %v559
    %v561 = vpop.f32.mrb[0].mxu0
    %v562 = vadd.f32 %v72, %v561
    %v563 = vpop.f32.mrb[0].mxu0
    %v564 = vadd.f32 %v76, %v563
    %565 = vmatprep.mubr.bf16.mxu0 0
    %566 = vmatmul.mubr.bf16.gmra.mrb[0].mxu0 %v230
    %v567 = vpop.f32.mrb[0].mxu0
    %v568 = vadd.f32 %v72, %v567
    %v569 = vpop.f32.mrb[0].mxu0
    %v570 = vadd.f32 %v76, %v569
    %v571 = vpop.f32.mrb[0].mxu0
    %v572 = vadd.f32 %v72, %v571
    %v573 = vpop.f32.mrb[0].mxu0
    %v574 = vadd.f32 %v76, %v573
    %575 = vmatprep.mubr.bf16.mxu0 0
    %576 = vmatmul.mubr.bf16.gmra.mrb[0].mxu0 %v233
    %v577 = vpop.f32.mrb[0].mxu0
    %v578 = vadd.f32 %v72, %v577
    %v579 = vpop.f32.mrb[0].mxu0
    %v580 = vadd.f32 %v76, %v579
    %v581 = vpop.f32.mrb[0].mxu0
    %v582 = vadd.f32 %v72, %v581
    %v583 = vpop.f32.mrb[0].mxu0
    %v584 = vadd.f32 %v76, %v583
    %585 = vmatprep.mubr.bf16.mxu0 0
    %586 = vmatmul.mubr.bf16.gmra.mrb[0].mxu0 %v236
    %v587 = vpop.f32.mrb[0].mxu0
    %v588 = vadd.f32 %v72, %v587
    %v589 = vpop.f32.mrb[0].mxu0
    %v590 = vadd.f32 %v76, %v589
    %v591 = vpop.f32.mrb[0].mxu0
    %v592 = vadd.f32 %v72, %v591
    %v593 = vpop.f32.mrb[0].mxu0
    %v594 = vadd.f32 %v76, %v593
    %595 = vmatprep.mubr.bf16.mxu0 0
    %596 = vmatmul.mubr.bf16.gmra.mrb[0].mxu0 %v239
    %v597 = vpop.f32.mrb[0].mxu0
    %v598 = vadd.f32 %v72, %v597
    %v599 = vpop.f32.mrb[0].mxu0
    %v600 = vadd.f32 %v76, %v599
    %v601 = vpop.f32.mrb[0].mxu0
    %v602 = vadd.f32 %v72, %v601
    %v603 = vpop.f32.mrb[0].mxu0
    %v604 = vadd.f32 %v76, %v603
    %605 = vmatprep.mubr.bf16.mxu0 0
    %606 = vmatmul.mubr.bf16.gmra.mrb[0].mxu0 %v242
    %v607 = vpop.f32.mrb[0].mxu0
    %v608 = vadd.f32 %v72, %v607
    %v609 = vpop.f32.mrb[0].mxu0
    %v610 = vadd.f32 %v76, %v609
    %v611 = vpop.f32.mrb[0].mxu0
    %v612 = vadd.f32 %v72, %v611
    %v613 = vpop.f32.mrb[0].mxu0
    %v614 = vadd.f32 %v76, %v613
    %615 = vmatprep.mubr.bf16.mxu0 0
    %616 = vmatmul.mubr.bf16.gmra.mrb[0].mxu0 %v245
    %v617 = vpop.f32.mrb[0].mxu0
    %v618 = vadd.f32 %v72, %v617
    %v619 = vpop.f32.mrb[0].mxu0
    %v620 = vadd.f32 %v76, %v619
    %v621 = vpop.f32.mrb[0].mxu0
    %v622 = vadd.f32 %v72, %v621
    %v623 = vpop.f32.mrb[0].mxu0
    %v624 = vadd.f32 %v76, %v623
    %625 = vmatprep.mubr.bf16.mxu0 0
    %626 = vmatmul.mubr.bf16.gmra.mrb[0].mxu0 %v248
    %v627 = vpop.f32.mrb[0].mxu0
    %v628 = vadd.f32 %v72, %v627
    %v629 = vpop.f32.mrb[0].mxu0
    %v630 = vadd.f32 %v76, %v629
    %v631 = vpop.f32.mrb[0].mxu0
    %v632 = vadd.f32 %v72, %v631
    %v633 = vpop.f32.mrb[0].mxu0
    %v634 = vadd.f32 %v76, %v633
    %635 = vdwg.mxu0
    %v636 = vmax.f32 %v285, 0.0
    %v637 = vmax.f32 %v287, 0.0
    %v638 = vmax.f32 %v478, 0.0
    %v639 = vmax.f32 %v480, 0.0
    %v640 = vmax.f32 %v289, 0.0
    %v641 = vmax.f32 %v291, 0.0
    %v642 = vmax.f32 %v482, 0.0
    %v643 = vmax.f32 %v484, 0.0
    %v644 = vmax.f32 %v295, 0.0
    %v645 = vmax.f32 %v297, 0.0
    %v646 = vmax.f32 %v488, 0.0
    %v647 = vmax.f32 %v490, 0.0
    %v648 = vmax.f32 %v299, 0.0
    %v649 = vmax.f32 %v301, 0.0
    %v650 = vmax.f32 %v492, 0.0
    %v651 = vmax.f32 %v494, 0.0
    %v652 = vmax.f32 %v305, 0.0
    %v653 = vmax.f32 %v307, 0.0
    %v654 = vmax.f32 %v498, 0.0
    %v655 = vmax.f32 %v500, 0.0
    %v656 = vmax.f32 %v309, 0.0
    %v657 = vmax.f32 %v311, 0.0
    %v658 = vmax.f32 %v502, 0.0
    %v659 = vmax.f32 %v504, 0.0
    %v660 = vmax.f32 %v315, 0.0
    %v661 = vmax.f32 %v317, 0.0
    %v662 = vmax.f32 %v508, 0.0
    %v663 = vmax.f32 %v510, 0.0
    %v664 = vmax.f32 %v319, 0.0
    %v665 = vmax.f32 %v321, 0.0
    %v666 = vmax.f32 %v512, 0.0
    %v667 = vmax.f32 %v514, 0.0
    %v668 = vmax.f32 %v325, 0.0
    %v669 = vmax.f32 %v327, 0.0
    %v670 = vmax.f32 %v518, 0.0
    %v671 = vmax.f32 %v520, 0.0
    %v672 = vmax.f32 %v329, 0.0
    %v673 = vmax.f32 %v331, 0.0
    %v674 = vmax.f32 %v522, 0.0
    %v675 = vmax.f32 %v524, 0.0
    %v676 = vmax.f32 %v335, 0.0
    %v677 = vmax.f32 %v337, 0.0
    %v678 = vmax.f32 %v528, 0.0
    %v679 = vmax.f32 %v530, 0.0
    %v680 = vmax.f32 %v339, 0.0
    %v681 = vmax.f32 %v341, 0.0
    %v682 = vmax.f32 %v532, 0.0
    %v683 = vmax.f32 %v534, 0.0
    %v684 = vmax.f32 %v345, 0.0
    %v685 = vmax.f32 %v347, 0.0
    %v686 = vmax.f32 %v538, 0.0
    %v687 = vmax.f32 %v540, 0.0
    %v688 = vmax.f32 %v349, 0.0
    %v689 = vmax.f32 %v351, 0.0
    %v690 = vmax.f32 %v542, 0.0
    %v691 = vmax.f32 %v544, 0.0
    %v692 = vmax.f32 %v355, 0.0
    %v693 = vmax.f32 %v357, 0.0
    %v694 = vmax.f32 %v548, 0.0
    %v695 = vmax.f32 %v550, 0.0
    %v696 = vmax.f32 %v359, 0.0
    %v697 = vmax.f32 %v361, 0.0
    %v698 = vmax.f32 %v552, 0.0
    %v699 = vmax.f32 %v554, 0.0
    %v700 = vmax.f32 %v365, 0.0
    %v701 = vmax.f32 %v367, 0.0
    %v702 = vmax.f32 %v558, 0.0
    %v703 = vmax.f32 %v560, 0.0
    %v704 = vmax.f32 %v369, 0.0
    %v705 = vmax.f32 %v371, 0.0
    %v706 = vmax.f32 %v562, 0.0
    %v707 = vmax.f32 %v564, 0.0
    %v708 = vmax.f32 %v375, 0.0
    %v709 = vmax.f32 %v377, 0.0
    %v710 = vmax.f32 %v568, 0.0
    %v711 = vmax.f32 %v570, 0.0
    %v712 = vmax.f32 %v379, 0.0
    %v713 = vmax.f32 %v381, 0.0
    %v714 = vmax.f32 %v572, 0.0
    %v715 = vmax.f32 %v574, 0.0
    %v716 = vmax.f32 %v385, 0.0
    %v717 = vmax.f32 %v387, 0.0
    %v718 = vmax.f32 %v578, 0.0
    %v719 = vmax.f32 %v580, 0.0
    %v720 = vmax.f32 %v389, 0.0
    %v721 = vmax.f32 %v391, 0.0
    %v722 = vmax.f32 %v582, 0.0
    %v723 = vmax.f32 %v584, 0.0
    %v724 = vmax.f32 %v395, 0.0
    %v725 = vmax.f32 %v397, 0.0
    %v726 = vmax.f32 %v588, 0.0
    %v727 = vmax.f32 %v590, 0.0
    %v728 = vmax.f32 %v399, 0.0
    %v729 = vmax.f32 %v401, 0.0
    %v730 = vmax.f32 %v592, 0.0
    %v731 = vmax.f32 %v594, 0.0
    %v732 = vmax.f32 %v405, 0.0
    %v733 = vmax.f32 %v407, 0.0
    %v734 = vmax.f32 %v598, 0.0
    %v735 = vmax.f32 %v600, 0.0
    %v736 = vmax.f32 %v409, 0.0
    %v737 = vmax.f32 %v411, 0.0
    %v738 = vmax.f32 %v602, 0.0
    %v739 = vmax.f32 %v604, 0.0
    %v740 = vmax.f32 %v415, 0.0
    %v741 = vmax.f32 %v417, 0.0
    %v742 = vmax.f32 %v608, 0.0
    %v743 = vmax.f32 %v610, 0.0
    %v744 = vmax.f32 %v419, 0.0
    %v745 = vmax.f32 %v421, 0.0
    %v746 = vmax.f32 %v612, 0.0
    %v747 = vmax.f32 %v614, 0.0
    %v748 = vmax.f32 %v425, 0.0
    %v749 = vmax.f32 %v427, 0.0
    %v750 = vmax.f32 %v618, 0.0
    %v751 = vmax.f32 %v620, 0.0
    %v752 = vmax.f32 %v429, 0.0
    %v753 = vmax.f32 %v431, 0.0
    %v754 = vmax.f32 %v622, 0.0
    %v755 = vmax.f32 %v624, 0.0
    %v756 = vmax.f32 %v435, 0.0
    %v757 = vmax.f32 %v437, 0.0
    %v758 = vmax.f32 %v628, 0.0
    %v759 = vmax.f32 %v630, 0.0
    %v760 = vmax.f32 %v439, 0.0
    %v761 = vmax.f32 %v441, 0.0
    %v762 = vmax.f32 %v632, 0.0
    %v763 = vmax.f32 %v634, 0.0
    %v764 = vld [vmem:[%s1] sm:$0xff]
    %v765 = vld [vmem:[%s1 + $0x8] sm:$0xff]
    %766 = vmatprep.subr.mxu0 %v637
    %767 = vmatpush1.msra.mxu0 %v636
    %768 = vmatprep.subr.mxu0 %v641
    %769 = vmatpush1.msra.mxu0 %v640
    %770 = vmatprep.subr.mxu0 %v645
    %771 = vmatpush1.msra.mxu0 %v644
    %772 = vmatprep.subr.mxu0 %v649
    %773 = vmatpush1.msra.mxu0 %v648
    %774 = vmatprep.subr.mxu0 %v653
    %775 = vmatpush1.msra.mxu0 %v652
    %776 = vmatprep.subr.mxu0 %v657
    %777 = vmatpush1.msra.mxu0 %v656
    %778 = vmatprep.subr.mxu0 %v661
    %779 = vmatpush1.msra.mxu0 %v660
    %780 = vmatprep.subr.mxu0 %v665
    %781 = vmatpush1.msra.mxu0 %v664
    %782 = vmatprep.subr.mxu0 %v669
    %783 = vmatpush1.msra.mxu0 %v668
    %784 = vmatprep.subr.mxu0 %v673
    %785 = vmatpush1.msra.mxu0 %v672
    %786 = vmatprep.subr.mxu0 %v677
    %787 = vmatpush1.msra.mxu0 %v676
    %788 = vmatprep.subr.mxu0 %v681
    %789 = vmatpush1.msra.mxu0 %v680
    %790 = vmatprep.subr.mxu0 %v685
    %791 = vmatpush1.msra.mxu0 %v684
    %792 = vmatprep.subr.mxu0 %v689
    %793 = vmatpush1.msra.mxu0 %v688
    %794 = vmatprep.subr.mxu0 %v693
    %795 = vmatpush1.msra.mxu0 %v692
    %796 = vmatprep.subr.mxu0 %v697
    %797 = vmatpush1.msra.mxu0 %v696
    %798 = vmatprep.subr.mxu0 %v701
    %799 = vmatpush1.msra.mxu0 %v700
    %800 = vmatprep.subr.mxu0 %v705
    %801 = vmatpush1.msra.mxu0 %v704
    %802 = vmatprep.subr.mxu0 %v709
    %803 = vmatpush1.msra.mxu0 %v708
    %804 = vmatprep.subr.mxu0 %v713
    %805 = vmatpush1.msra.mxu0 %v712
    %806 = vmatprep.subr.mxu0 %v717
    %807 = vmatpush1.msra.mxu0 %v716
    %808 = vmatprep.subr.mxu0 %v721
    %809 = vmatpush1.msra.mxu0 %v720
    %810 = vmatprep.subr.mxu0 %v725
    %811 = vmatpush1.msra.mxu0 %v724
    %812 = vmatprep.subr.mxu0 %v729
    %813 = vmatpush1.msra.mxu0 %v728
    %814 = vmatprep.subr.mxu0 %v733
    %815 = vmatpush1.msra.mxu0 %v732
    %816 = vmatprep.subr.mxu0 %v737
    %817 = vmatpush1.msra.mxu0 %v736
    %818 = vmatprep.subr.mxu0 %v741
    %819 = vmatpush1.msra.mxu0 %v740
    %820 = vmatprep.subr.mxu0 %v745
    %821 = vmatpush1.msra.mxu0 %v744
    %822 = vmatprep.subr.mxu0 %v749
    %823 = vmatpush1.msra.mxu0 %v748
    %824 = vmatprep.subr.mxu0 %v753
    %825 = vmatpush1.msra.mxu0 %v752
    %826 = vmatprep.subr.mxu0 %v757
    %827 = vmatpush1.msra.mxu0 %v756
    %828 = vmatprep.subr.mxu0 %v761
    %829 = vmatpush1.msra.mxu0 %v760
    %830 = vmatprep.mubr.f32.mxu0 %v765
    %831 = vmatmul.mubr.f32.gmra.mrb[0].mxu0 %v764
    %v832 = vpop.f32.mrb[0].mxu0
    %v833 = vadd.f32 0.0, %v832
    %v834 = vpop.f32.mrb[0].mxu0
    %v835 = vadd.f32 0.0, %v834
    %836 = vdwg.mxu0
    %837 = vmatprep.subr.mxu0 %v639
    %838 = vmatpush1.msra.mxu0 %v638
    %839 = vmatprep.subr.mxu0 %v643
    %840 = vmatpush1.msra.mxu0 %v642
    %841 = vmatprep.subr.mxu0 %v647
    %842 = vmatpush1.msra.mxu0 %v646
    %843 = vmatprep.subr.mxu0 %v651
    %844 = vmatpush1.msra.mxu0 %v650
    %845 = vmatprep.subr.mxu0 %v655
    %846 = vmatpush1.msra.mxu0 %v654
    %847 = vmatprep.subr.mxu0 %v659
    %848 = vmatpush1.msra.mxu0 %v658
    %849 = vmatprep.subr.mxu0 %v663
    %850 = vmatpush1.msra.mxu0 %v662
    %851 = vmatprep.subr.mxu0 %v667
    %852 = vmatpush1.msra.mxu0 %v666
    %853 = vmatprep.subr.mxu0 %v671
    %854 = vmatpush1.msra.mxu0 %v670
    %855 = vmatprep.subr.mxu0 %v675
    %856 = vmatpush1.msra.mxu0 %v674
    %857 = vmatprep.subr.mxu0 %v679
    %858 = vmatpush1.msra.mxu0 %v678
    %859 = vmatprep.subr.mxu0 %v683
    %860 = vmatpush1.msra.mxu0 %v682
    %861 = vmatprep.subr.mxu0 %v687
    %862 = vmatpush1.msra.mxu0 %v686
    %863 = vmatprep.subr.mxu0 %v691
    %864 = vmatpush1.msra.mxu0 %v690
    %865 = vmatprep.subr.mxu0 %v695
    %866 = vmatpush1.msra.mxu0 %v694
    %867 = vmatprep.subr.mxu0 %v699
    %868 = vmatpush1.msra.mxu0 %v698
    %869 = vmatprep.subr.mxu0 %v703
    %870 = vmatpush1.msra.mxu0 %v702
    %871 = vmatprep.subr.mxu0 %v707
    %872 = vmatpush1.msra.mxu0 %v706
    %873 = vmatprep.subr.mxu0 %v711
    %874 = vmatpush1.msra.mxu0 %v710
    %875 = vmatprep.subr.mxu0 %v715
    %876 = vmatpush1.msra.mxu0 %v714
    %877 = vmatprep.subr.mxu0 %v719
    %878 = vmatpush1.msra.mxu0 %v718
    %879 = vmatprep.subr.mxu0 %v723
    %880 = vmatpush1.msra.mxu0 %v722
    %881 = vmatprep.subr.mxu0 %v727
    %882 = vmatpush1.msra.mxu0 %v726
    %883 = vmatprep.subr.mxu0 %v731
    %884 = vmatpush1.msra.mxu0 %v730
    %885 = vmatprep.subr.mxu0 %v735
    %886 = vmatpush1.msra.mxu0 %v734
    %887 = vmatprep.subr.mxu0 %v739
    %888 = vmatpush1.msra.mxu0 %v738
    %889 = vmatprep.subr.mxu0 %v743
    %890 = vmatpush1.msra.mxu0 %v742
    %891 = vmatprep.subr.mxu0 %v747
    %892 = vmatpush1.msra.mxu0 %v746
    %893 = vmatprep.subr.mxu0 %v751
    %894 = vmatpush1.msra.mxu0 %v750
    %895 = vmatprep.subr.mxu0 %v755
    %896 = vmatpush1.msra.mxu0 %v754
    %897 = vmatprep.subr.mxu0 %v759
    %898 = vmatpush1.msra.mxu0 %v758
    %899 = vmatprep.subr.mxu0 %v763
    %900 = vmatpush1.msra.mxu0 %v762
    %901 = vmatprep.mubr.f32.mxu0 %v765
    %902 = vmatmul.mubr.f32.gmra.mrb[0].mxu0 %v764
    %v903 = vpop.f32.mrb[0].mxu0
    %v904 = vadd.f32 0.0, %v903
    %v905 = vpop.f32.mrb[0].mxu0
    %v906 = vadd.f32 0.0, %v905
    %907 = vdwg.mxu0
    %908 = vst [vmem:[#allocation2] sm:$0xff] %v833
    %909 = vst [vmem:[#allocation2 + $0x8] sm:$0xff] %v835
    %910 = vst [vmem:[#allocation2 + $0x10] sm:$0xff] %v904
    %911 = vst [vmem:[#allocation2 + $0x18] sm:$0xff] %v906
    // Predicated region
    $region18: #{tpu_custom_call.1} parent=1 // pred_check
      _
    $region19: #{tpu_custom_call.1} parent=1 // pred_check_branch
      %913 = sbr.rel (0) target = $region21
    $region20: #{tpu_custom_call.1} parent=1 // pred_region
      %s915 = ssub.s32 512, 512
      %916 = vsyncadd [#allocation3], %s915
      %s918 = sshll.u32 [#allocation2], 4
      %s919 = int_to_ptr.vmem [resolvable:$true] %s918
      %921 = dma.vmem_to_hbm [thread:$0]  %s919, 512, %s4, [#allocation3]
    $region21: #{tpu_custom_call.1} parent=1 // pred_fallthru
      _
    // Predicated region
    $region22: #{tpu_custom_call.1} parent=1 // pred_check
      _
    $region23: #{tpu_custom_call.1} parent=1 // pred_check_branch
      %923 = sbr.rel (0) target = $region25
    $region24: #{tpu_custom_call.1} parent=1 // pred_region
      %924 = dma.done [#allocation3], 512
    $region25: #{tpu_custom_call.1} parent=1 // pred_fallthru
      _
    %925 = vsyncpa [#allocation3], 1

</llo_original>
